<compile_context>
chip_gen: v5e
topology: v5e:2x2
jax: 0.10.0
libtpu: 0.0.40
codegen_flags: <defaults>
</compile_context>

<pallas_src>
import jax
import jax.numpy as jnp
from jax import lax
from jax.experimental import pallas as pl
from jax.experimental.pallas import tpu as pltpu

EPS = 1e-5
NODE_TILE = 1024          # node rows per grid step (multiple of 8)
EDGE_TILE = 4096          # edge rows per grid step (multiple of 8*k for any k below)
VMEM_LIMIT = 32 * 1024 * 1024
_HIGH = jax.lax.Precision.HIGHEST   # reference only


def _round_up(x, m):
    return ((x + m - 1) // m) * m


# ---------------------------------------------------------------------------
# Kernel 1: fused node linear   h12 = h @ [w0|w1] + [b0|b1]   (one lane-dense out)
# ---------------------------------------------------------------------------
def _node_kernel(h_ref, w01_ref, b01_ref, o_ref):
    acc = jnp.dot(h_ref[...], w01_ref[...], preferred_element_type=jnp.float32)
    o_ref[...] = (acc + b01_ref[...]).astype(o_ref.dtype)


def node_linear(h, w01, b01, *, tile):
    n_pad, din = h.shape
    d2 = w01.shape[1]
    return pl.pallas_call(
        _node_kernel,
        out_shape=jax.ShapeDtypeStruct((n_pad, d2), jnp.float32),
        grid_spec=pltpu.PrefetchScalarGridSpec(
            num_scalar_prefetch=0,
            grid=(n_pad // tile,),
            in_specs=[
                pl.BlockSpec((tile, din), lambda i: (i, 0)),
                pl.BlockSpec((din, d2), lambda i: (0, 0)),   # weight resident
                pl.BlockSpec((1, d2), lambda i: (0, 0)),     # bias resident
            ],
            out_specs=pl.BlockSpec((tile, d2), lambda i: (i, 0)),
        ),
        compiler_params=pltpu.CompilerParams(
            dimension_semantics=("parallel",),
            vmem_limit_bytes=VMEM_LIMIT),
    )(h, w01, b01)


# ---------------------------------------------------------------------------
# Kernel 2: x = e @ w2 + b2 + hg  (written out), plus per-core partial sum / sumsq
# grid = (2, tiles_per_core): leading axis is 'parallel' (2 TCs on v7x),
# trailing axis is the 'arbitrary' reduction over edge tiles.
# ---------------------------------------------------------------------------
def _stats_kernel(nv_ref, e_ref, hg_ref, w2_ref, b2_ref,
                  x_ref, psum_ref, psq_ref, acc_s, acc_q):
    c = pl.program_id(0)
    t = pl.program_id(1)
    tpc = pl.num_programs(1)

    @pl.when(t == 0)
    def _():
        acc_s[...] = jnp.zeros_like(acc_s)
        acc_q[...] = jnp.zeros_like(acc_q)

    x = (jnp.dot(e_ref[...], w2_ref[...], preferred_element_type=jnp.float32)
         + b2_ref[...] + hg_ref[...])
    x_ref[...] = x.astype(x_ref.dtype)

    te = e_ref.shape[0]
    row = (c * tpc + t) * te + lax.broadcasted_iota(jnp.int32, (te, 1), 0)
    xm = jnp.where(row < nv_ref[0], x, 0.0)       # mask padded edge rows
    # TODO(synk): shifted/Welford sums for very large edge counts.
    acc_s[...] += jnp.sum(xm, axis=0, keepdims=True)
    acc_q[...] += jnp.sum(xm * xm, axis=0, keepdims=True)

    @pl.when(t == tpc - 1)
    def _():
        # write per-core partials (row 0 of the 8-sublane output block is used)
        psum_ref[...] = jnp.broadcast_to(acc_s[...][:, None, :], psum_ref.shape)
        psq_ref[...] = jnp.broadcast_to(acc_q[...][:, None, :], psq_ref.shape)


def edge_stats(n_valid, e_p, hg_p, w2, b2, *, tile, tiles_per_core):
    e_pad, d = e_p.shape
    x_sds = jax.ShapeDtypeStruct((e_pad, d), jnp.float32)
    p_sds = jax.ShapeDtypeStruct((2, 8, d), jnp.float32)   # 8-sublane padded partials
    return pl.pallas_call(
        _stats_kernel,
        out_shape=(x_sds, p_sds, p_sds),
        grid_spec=pltpu.PrefetchScalarGridSpec(
            num_scalar_prefetch=1,                          # n_valid lives in SMEM
            grid=(2, tiles_per_core),
            in_specs=[
                pl.BlockSpec((tile, d), lambda c, t, n: (c * tiles_per_core + t, 0)),
                pl.BlockSpec((tile, d), lambda c, t, n: (c * tiles_per_core + t, 0)),
                pl.BlockSpec((d, d), lambda c, t, n: (0, 0)),   # w2 resident
                pl.BlockSpec((1, d), lambda c, t, n: (0, 0)),   # b2 resident
            ],
            out_specs=(
                pl.BlockSpec((tile, d), lambda c, t, n: (c * tiles_per_core + t, 0)),
                pl.BlockSpec((1, 8, d), lambda c, t, n: (c, 0, 0)),
                pl.BlockSpec((1, 8, d), lambda c, t, n: (c, 0, 0)),
            ),
            scratch_shapes=[pltpu.VMEM((1, d), jnp.float32),
                            pltpu.VMEM((1, d), jnp.float32)],
        ),
        compiler_params=pltpu.CompilerParams(
            dimension_semantics=("parallel", "arbitrary"),
            vmem_limit_bytes=VMEM_LIMIT),
    )(n_valid, e_p, hg_p, w2, b2)


# ---------------------------------------------------------------------------
# Kernel 3: purely elementwise apply   out = e + silu(x * scale + shift)
# (fed in a lane-dense layout by the wrapper; output aliases the e buffer)
# ---------------------------------------------------------------------------
def _apply_kernel(e_ref, x_ref, scale_ref, shift_ref, o_ref):
    y = x_ref[...] * scale_ref[...] + shift_ref[...]
    o_ref[...] = (e_ref[...] + y * jax.nn.sigmoid(y)).astype(o_ref.dtype)


def edge_apply(e_r, x_r, scale_r, shift_r, *, tile):
    rows, width = e_r.shape
    return pl.pallas_call(
        _apply_kernel,
        out_shape=jax.ShapeDtypeStruct((rows, width), jnp.float32),
        grid_spec=pltpu.PrefetchScalarGridSpec(
            num_scalar_prefetch=0,
            grid=(rows // tile,),
            in_specs=[
                pl.BlockSpec((tile, width), lambda i: (i, 0)),
                pl.BlockSpec((tile, width), lambda i: (i, 0)),
                pl.BlockSpec((1, width), lambda i: (0, 0)),
                pl.BlockSpec((1, width), lambda i: (0, 0)),
            ],
            out_specs=pl.BlockSpec((tile, width), lambda i: (i, 0)),
        ),
        input_output_aliases={0: 0},   # residual re-uses the (padded, reshaped) e buffer
        compiler_params=pltpu.CompilerParams(
            dimension_semantics=("parallel",),
            vmem_limit_bytes=VMEM_LIMIT),
    )(e_r, x_r, scale_r, shift_r)


# ---------------------------------------------------------------------------
# Full module forward
# ---------------------------------------------------------------------------
@jax.jit
def edge_emb_net_forward(h, e, edge_index, params):
    n_nodes = h.shape[0]
    n_edges, d = e.shape

    # --- node pass: single fused matmul, one (tile, 2d) output
    tn = min(NODE_TILE, _round_up(n_nodes, 8))
    n_pad = _round_up(n_nodes, tn)
    h_p = jnp.pad(h, ((0, n_pad - n_nodes), (0, 0)))
    w01 = jnp.concatenate([params["w0"], params["w1"]], axis=1)
    b01 = jnp.concatenate([params["b0"], params["b1"]], axis=1)
    h12 = node_linear(h_p, w01, b01, tile=tn)

    # --- real gather (XLA gather, O(E*d)); replaces the old one-hot MXU gather.
    #     Summed so only one (E, d) array reaches HBM / the stats kernel.
    src = edge_index[0].astype(jnp.int32)
    dst = edge_index[1].astype(jnp.int32)
    hg = h12[src, :d] + h12[dst, d:]

    # --- edge tiling (aligned so the apply pass can be lane-dense)
    k = 128 // d if (d < 128 and 128 % d == 0) else 1
    align = 8 * k
    te = min(EDGE_TILE, _round_up(n_edges, align))
    e_pad = _round_up(n_edges, 2 * te)            # 2-way TC split of the stats pass
    tiles_per_core = e_pad // (2 * te)
    pad = ((0, e_pad - n_edges), (0, 0))
    e_p = jnp.pad(e, pad)
    hg_p = jnp.pad(hg, pad)
    n_valid = jnp.array([n_edges], jnp.int32)

    # --- pass 1 over edges: emit x, accumulate per-core sum / sumsq
    x, psum, psq = edge_stats(n_valid, e_p, hg_p, params["w2"], params["b2"],
                              tile=te, tiles_per_core=tiles_per_core)

    # --- fold training-mode BN (biased variance) into scale/shift in plain JAX
    cnt = jnp.float32(n_edges)
    s = psum[:, 0, :].sum(axis=0, keepdims=True)
    q = psq[:, 0, :].sum(axis=0, keepdims=True)
    mean = s / cnt
    var = q / cnt - mean * mean
    inv = lax.rsqrt(var + EPS)
    scale = params["gamma"] * inv
    shift = params["beta"] - mean * scale

    # --- pass 2 over edges: lane-dense elementwise apply + residual
    rows = e_pad // k
    width = d * k
    e_r = e_p.reshape(rows, width)
    x_r = x.reshape(rows, width)
    scale_r = jnp.tile(scale, (1, k))
    shift_r = jnp.tile(shift, (1, k))
    out_r = edge_apply(e_r, x_r, scale_r, shift_r, tile=te // k)
    return out_r.reshape(e_pad, d)[:n_edges]


# Pure-JAX reference for the correctness check (HIGHEST precision).
def reference_forward(h, e, edge_index, params):
    dot = lambda a, b: jnp.dot(a, b, precision=_HIGH)
    h1 = dot(h, params["w0"]) + params["b0"]
    h2 = dot(h, params["w1"]) + params["b1"]
    e3 = dot(e, params["w2"]) + params["b2"]
    x = e3 + h1[edge_index[0]] + h2[edge_index[1]]
    mean = jnp.mean(x, axis=0, keepdims=True)
    var = jnp.mean((x - mean) ** 2, axis=0, keepdims=True)
    y = (x - mean) / jnp.sqrt(var + EPS) * params["gamma"] + params["beta"]
    return e + y * jax.nn.sigmoid(y)


if __name__ == "__main__":
    # Small shapes implied by the forward: in_dim == out_dim (residual e + ...)
    N_NODES, N_EDGES, DIM = 16, 24, 32

    key = jax.random.PRNGKey(0)
    keys = jax.random.split(key, 8)

    init = 1.0 / jnp.sqrt(DIM)
    params = {
        "w0": jax.random.uniform(keys[0], (DIM, DIM), jnp.float32, -init, init),
        "b0": jax.random.uniform(keys[1], (1, DIM), jnp.float32, -init, init),
        "w1": jax.random.uniform(keys[2], (DIM, DIM), jnp.float32, -init, init),
        "b1": jax.random.uniform(keys[3], (1, DIM), jnp.float32, -init, init),
        "w2": jax.random.uniform(keys[4], (DIM, DIM), jnp.float32, -init, init),
        "b2": jax.random.uniform(keys[5], (1, DIM), jnp.float32, -init, init),
        # BatchNorm affine params (PyTorch default init: weight=1, bias=0)
        "gamma": jnp.ones((1, DIM), jnp.float32),
        "beta": jnp.zeros((1, DIM), jnp.float32),
    }

    h = jax.random.normal(keys[6], (N_NODES, DIM), jnp.float32)
    e = jax.random.normal(keys[7], (N_EDGES, DIM), jnp.float32)
    edge_index = jax.random.randint(
        jax.random.PRNGKey(42), (2, N_EDGES), 0, N_NODES, dtype=jnp.int32
    )

    out = edge_emb_net_forward(h, e, edge_index, params)
    out = jax.block_until_ready(out)

    ref = reference_forward(h, e, edge_index, params)
    assert out.shape == (N_EDGES, DIM)
    # Kernels now run the matmuls at DEFAULT MXU precision (bf16 inputs, f32
    # accumulate) per the perf review, and the BN statistics path amplifies that
    # rounding slightly, so the tolerance is widened.  Structural bugs (wrong
    # gather / BN stats / residual) produce errors orders of magnitude larger.
    assert jnp.allclose(out, ref, atol=5e-2, rtol=5e-2), "mismatch vs reference"

    print("KERNEL_OK")
</pallas_src>

<mosaic_0001>
module attributes {stable_mosaic.version = 11 : i64} {
  func.func @_node_kernel(%arg0: i32, %arg1: memref<16x32xf32, #tpu.memory_space<vmem>>, %arg2: memref<32x64xf32, #tpu.memory_space<vmem>>, %arg3: memref<1x64xf32, #tpu.memory_space<vmem>>, %arg4: memref<16x64xf32, #tpu.memory_space<vmem>>) attributes {dimension_semantics = [#tpu.dimension_semantics<parallel>], iteration_bounds = array<i64: 1>, scalar_prefetch = 0 : i64, scratch_operands = 0 : i64, tpu.core_type = #tpu.core_type<tc>, window_params = [{transform_indices = @transform_0, window_bounds = array<i64: 16, 32>}, {pipeline_mode = #tpu.pipeline_mode<synchronous>, transform_indices = @transform_1, window_bounds = array<i64: 32, 64>}, {pipeline_mode = #tpu.pipeline_mode<synchronous>, transform_indices = @transform_2, window_bounds = array<i64: 1, 64>}, {transform_indices = @transform_3, window_bounds = array<i64: 16, 64>}]} {
    %c0 = arith.constant 0 : index
    %c0_0 = arith.constant 0 : index
    %0 = vector.load %arg1[%c0, %c0_0] : memref<16x32xf32, #tpu.memory_space<vmem>>, vector<16x32xf32>
    %c0_1 = arith.constant 0 : index
    %c0_2 = arith.constant 0 : index
    %1 = vector.load %arg2[%c0_1, %c0_2] : memref<32x64xf32, #tpu.memory_space<vmem>>, vector<32x64xf32>
    %cst = arith.constant dense<0.000000e+00> : vector<16x64xf32>
    %2 = tpu.matmul %0, %1, %cst {dimension_numbers = #tpu.dot_dimension_numbers<[1], [0], [0], [1], [0, 0, 1, 1], [], []>} : vector<16x32xf32>, vector<32x64xf32>, vector<16x64xf32> -> vector<16x64xf32>
    %c0_3 = arith.constant 0 : index
    %c0_4 = arith.constant 0 : index
    %3 = vector.load %arg3[%c0_3, %c0_4] : memref<1x64xf32, #tpu.memory_space<vmem>>, vector<1x64xf32>
    %4 = vector.broadcast %3 : vector<1x64xf32> to vector<16x64xf32>
    %5 = arith.addf %2, %4 : vector<16x64xf32>
    %c0_5 = arith.constant 0 : index
    %c0_6 = arith.constant 0 : index
    %6 = vector.load %arg4[%c0_5, %c0_6] : memref<16x64xf32, #tpu.memory_space<vmem>>, vector<16x64xf32>
    tpu.vector_store %arg4[%c0_5, %c0_6], %5 {strides = array<i32>} : memref<16x64xf32, #tpu.memory_space<vmem>>, vector<16x64xf32>,
    return
  }
  func.func @transform_0(%arg0: i32) -> (i32, i32) {
    %c0_i32 = arith.constant 0 : i32
    %c0_i32_0 = arith.constant 0 : i32
    return %arg0, %c0_i32 : i32, i32
  }
  func.func @transform_1(%arg0: i32) -> (i32, i32) {
    %c0_i32 = arith.constant 0 : i32
    %c0_i32_0 = arith.constant 0 : i32
    %c0_i32_1 = arith.constant 0 : i32
    return %c0_i32, %c0_i32_0 : i32, i32
  }
  func.func @transform_2(%arg0: i32) -> (i32, i32) {
    %c0_i32 = arith.constant 0 : i32
    %c0_i32_0 = arith.constant 0 : i32
    %c0_i32_1 = arith.constant 0 : i32
    return %c0_i32, %c0_i32_0 : i32, i32
  }
  func.func @transform_3(%arg0: i32) -> (i32, i32) {
    %c0_i32 = arith.constant 0 : i32
    %c0_i32_0 = arith.constant 0 : i32
    return %arg0, %c0_i32 : i32, i32
  }
}

module attributes {stable_mosaic.version = 11 : i64} {
  func.func @_stats_kernel(%arg0: i32, %arg1: i32, %arg2: memref<1xi32, #tpu.memory_space<smem>>, %arg3: memref<32x32xf32, #tpu.memory_space<vmem>>, %arg4: memref<32x32xf32, #tpu.memory_space<vmem>>, %arg5: memref<32x32xf32, #tpu.memory_space<vmem>>, %arg6: memref<1x32xf32, #tpu.memory_space<vmem>>, %arg7: memref<32x32xf32, #tpu.memory_space<vmem>>, %arg8: memref<1x8x32xf32, #tpu.memory_space<vmem>>, %arg9: memref<1x8x32xf32, #tpu.memory_space<vmem>>, %arg10: memref<1x32xf32, #tpu.memory_space<vmem>>, %arg11: memref<1x32xf32, #tpu.memory_space<vmem>>) attributes {dimension_semantics = [#tpu.dimension_semantics<parallel>, #tpu.dimension_semantics<arbitrary>], iteration_bounds = array<i64: 2, 1>, scalar_prefetch = 1 : i64, scratch_operands = 2 : i64, tpu.core_type = #tpu.core_type<tc>, window_params = [{transform_indices = @transform_0, window_bounds = array<i64: 32, 32>}, {transform_indices = @transform_1, window_bounds = array<i64: 32, 32>}, {pipeline_mode = #tpu.pipeline_mode<synchronous>, transform_indices = @transform_2, window_bounds = array<i64: 32, 32>}, {pipeline_mode = #tpu.pipeline_mode<synchronous>, transform_indices = @transform_3, window_bounds = array<i64: 1, 32>}, {transform_indices = @transform_4, window_bounds = array<i64: 32, 32>}, {transform_indices = @transform_5, window_bounds = array<i64: 1, 8, 32>}, {transform_indices = @transform_6, window_bounds = array<i64: 1, 8, 32>}]} {
    %c0_i32 = arith.constant 0 : i32
    %0 = arith.cmpi eq, %arg1, %c0_i32 : i32
    %1 = arith.extui %0 : i1 to i32
    %c0_i32_0 = arith.constant 0 : i32
    %2 = arith.cmpi ne, %1, %c0_i32_0 : i32
    scf.if %2 {
      %cst_24 = arith.constant 0.000000e+00 : f32
      %39 = vector.broadcast %cst_24 : f32 to vector<1x32xf32>
      %c0_25 = arith.constant 0 : index
      %c0_26 = arith.constant 0 : index
      %40 = vector.load %arg10[%c0_25, %c0_26] : memref<1x32xf32, #tpu.memory_space<vmem>>, vector<1x32xf32>
      tpu.vector_store %arg10[%c0_25, %c0_26], %39 {strides = array<i32>} : memref<1x32xf32, #tpu.memory_space<vmem>>, vector<1x32xf32>,
      %cst_27 = arith.constant 0.000000e+00 : f32
      %41 = vector.broadcast %cst_27 : f32 to vector<1x32xf32>
      %c0_28 = arith.constant 0 : index
      %c0_29 = arith.constant 0 : index
      %42 = vector.load %arg11[%c0_28, %c0_29] : memref<1x32xf32, #tpu.memory_space<vmem>>, vector<1x32xf32>
      tpu.vector_store %arg11[%c0_28, %c0_29], %41 {strides = array<i32>} : memref<1x32xf32, #tpu.memory_space<vmem>>, vector<1x32xf32>,
    } else {
    }
    %c0 = arith.constant 0 : index
    %c0_1 = arith.constant 0 : index
    %3 = vector.load %arg3[%c0, %c0_1] : memref<32x32xf32, #tpu.memory_space<vmem>>, vector<32x32xf32>
    %c0_2 = arith.constant 0 : index
    %c0_3 = arith.constant 0 : index
    %4 = vector.load %arg5[%c0_2, %c0_3] : memref<32x32xf32, #tpu.memory_space<vmem>>, vector<32x32xf32>
    %cst = arith.constant dense<0.000000e+00> : vector<32x32xf32>
    %5 = tpu.matmul %3, %4, %cst {dimension_numbers = #tpu.dot_dimension_numbers<[1], [0], [0], [1], [0, 0, 1, 1], [], []>} : vector<32x32xf32>, vector<32x32xf32>, vector<32x32xf32> -> vector<32x32xf32>
    %c0_4 = arith.constant 0 : index
    %c0_5 = arith.constant 0 : index
    %6 = vector.load %arg6[%c0_4, %c0_5] : memref<1x32xf32, #tpu.memory_space<vmem>>, vector<1x32xf32>
    %7 = vector.broadcast %6 : vector<1x32xf32> to vector<32x32xf32>
    %8 = arith.addf %5, %7 : vector<32x32xf32>
    %c0_6 = arith.constant 0 : index
    %c0_7 = arith.constant 0 : index
    %9 = vector.load %arg4[%c0_6, %c0_7] : memref<32x32xf32, #tpu.memory_space<vmem>>, vector<32x32xf32>
    %10 = arith.addf %8, %9 : vector<32x32xf32>
    %c0_8 = arith.constant 0 : index
    %c0_9 = arith.constant 0 : index
    %11 = vector.load %arg7[%c0_8, %c0_9] : memref<32x32xf32, #tpu.memory_space<vmem>>, vector<32x32xf32>
    tpu.vector_store %arg7[%c0_8, %c0_9], %10 {strides = array<i32>} : memref<32x32xf32, #tpu.memory_space<vmem>>, vector<32x32xf32>,
    %c1_i32 = arith.constant 1 : i32
    %12 = arith.muli %arg0, %c1_i32 : i32
    %13 = arith.addi %12, %arg1 : i32
    %c32_i32 = arith.constant 32 : i32
    %14 = arith.muli %13, %c32_i32 : i32
    %15 = tpu.iota {dimensions = array<i32: 0>} : vector<32x1xi32>
    %16 = vector.broadcast %14 : i32 to vector<32x1xi32>
    %17 = arith.addi %16, %15 : vector<32x1xi32>
    %c0_10 = arith.constant 0 : index
    %18 = memref.load %arg2[%c0_10] : memref<1xi32, #tpu.memory_space<smem>>
    %19 = vector.broadcast %18 : i32 to vector<32x1xi32>
    %20 = arith.cmpi slt, %17, %19 : vector<32x1xi32>
    %cst_11 = arith.constant 0.000000e+00 : f32
    %21 = vector.shape_cast %20 : vector<32x1xi1> to vector<32x1xi1>
    %22 = vector.broadcast %21 : vector<32x1xi1> to vector<32x32xi1>
    %23 = vector.broadcast %cst_11 : f32 to vector<32x32xf32>
    %24 = arith.select %22, %10, %23 : vector<32x32xi1>, vector<32x32xf32>
    %c0_12 = arith.constant 0 : index
    %c0_13 = arith.constant 0 : index
    %25 = vector.load %arg10[%c0_12, %c0_13] : memref<1x32xf32, #tpu.memory_space<vmem>>, vector<1x32xf32>
    %cst_14 = arith.constant dense<0.000000e+00> : vector<32xf32>
    %26 = vector.multi_reduction <add>, %24, %cst_14 [0] : vector<32x32xf32> to vector<32xf32>
    %27 = vector.shape_cast %26 : vector<32xf32> to vector<1x32xf32>
    %28 = arith.addf %25, %27 : vector<1x32xf32>
    %c0_15 = arith.constant 0 : index
    %c0_16 = arith.constant 0 : index
    %29 = vector.load %arg10[%c0_15, %c0_16] : memref<1x32xf32, #tpu.memory_space<vmem>>, vector<1x32xf32>
    tpu.vector_store %arg10[%c0_15, %c0_16], %28 {strides = array<i32>} : memref<1x32xf32, #tpu.memory_space<vmem>>, vector<1x32xf32>,
    %c0_17 = arith.constant 0 : index
    %c0_18 = arith.constant 0 : index
    %30 = vector.load %arg11[%c0_17, %c0_18] : memref<1x32xf32, #tpu.memory_space<vmem>>, vector<1x32xf32>
    %31 = arith.mulf %24, %24 : vector<32x32xf32>
    %cst_19 = arith.constant dense<0.000000e+00> : vector<32xf32>
    %32 = vector.multi_reduction <add>, %31, %cst_19 [0] : vector<32x32xf32> to vector<32xf32>
    %33 = vector.shape_cast %32 : vector<32xf32> to vector<1x32xf32>
    %34 = arith.addf %30, %33 : vector<1x32xf32>
    %c0_20 = arith.constant 0 : index
    %c0_21 = arith.constant 0 : index
    %35 = vector.load %arg11[%c0_20, %c0_21] : memref<1x32xf32, #tpu.memory_space<vmem>>, vector<1x32xf32>
    tpu.vector_store %arg11[%c0_20, %c0_21], %34 {strides = array<i32>} : memref<1x32xf32, #tpu.memory_space<vmem>>, vector<1x32xf32>,
    %c0_i32_22 = arith.constant 0 : i32
    %36 = arith.cmpi eq, %arg1, %c0_i32_22 : i32
    %37 = arith.extui %36 : i1 to i32
    %c0_i32_23 = arith.constant 0 : i32
    %38 = arith.cmpi ne, %37, %c0_i32_23 : i32
    scf.if %38 {
      %c0_24 = arith.constant 0 : index
      %c0_25 = arith.constant 0 : index
      %39 = vector.load %arg10[%c0_24, %c0_25] : memref<1x32xf32, #tpu.memory_space<vmem>>, vector<1x32xf32>
      %40 = vector.shape_cast %39 : vector<1x32xf32> to vector<1x1x32xf32>
      %41 = vector.shape_cast %40 : vector<1x1x32xf32> to vector<1x1x32xf32>
      %42 = vector.broadcast %41 : vector<1x1x32xf32> to vector<1x8x32xf32>
      %c0_26 = arith.constant 0 : index
      %c0_27 = arith.constant 0 : index
      %c0_28 = arith.constant 0 : index
      %43 = vector.load %arg8[%c0_26, %c0_27, %c0_28] : memref<1x8x32xf32, #tpu.memory_space<vmem>>, vector<1x8x32xf32>
      tpu.vector_store %arg8[%c0_26, %c0_27, %c0_28], %42 {strides = array<i32>} : memref<1x8x32xf32, #tpu.memory_space<vmem>>, vector<1x8x32xf32>,
      %c0_29 = arith.constant 0 : index
      %c0_30 = arith.constant 0 : index
      %44 = vector.load %arg11[%c0_29, %c0_30] : memref<1x32xf32, #tpu.memory_space<vmem>>, vector<1x32xf32>
      %45 = vector.shape_cast %44 : vector<1x32xf32> to vector<1x1x32xf32>
      %46 = vector.shape_cast %45 : vector<1x1x32xf32> to vector<1x1x32xf32>
      %47 = vector.broadcast %46 : vector<1x1x32xf32> to vector<1x8x32xf32>
      %c0_31 = arith.constant 0 : index
      %c0_32 = arith.constant 0 : index
      %c0_33 = arith.constant 0 : index
      %48 = vector.load %arg9[%c0_31, %c0_32, %c0_33] : memref<1x8x32xf32, #tpu.memory_space<vmem>>, vector<1x8x32xf32>
      tpu.vector_store %arg9[%c0_31, %c0_32, %c0_33], %47 {strides = array<i32>} : memref<1x8x32xf32, #tpu.memory_space<vmem>>, vector<1x8x32xf32>,
    } else {
    }
    return
  }
  func.func @transform_0(%arg0: i32, %arg1: i32, %arg2: memref<1xi32, #tpu.memory_space<smem>>) -> (i32, i32) {
    %c1_i32 = arith.constant 1 : i32
    %0 = arith.muli %arg0, %c1_i32 : i32
    %1 = arith.addi %0, %arg1 : i32
    %c0_i32 = arith.constant 0 : i32
    %c0_i32_0 = arith.constant 0 : i32
    return %1, %c0_i32 : i32, i32
  }
  func.func @transform_1(%arg0: i32, %arg1: i32, %arg2: memref<1xi32, #tpu.memory_space<smem>>) -> (i32, i32) {
    %c1_i32 = arith.constant 1 : i32
    %0 = arith.muli %arg0, %c1_i32 : i32
    %1 = arith.addi %0, %arg1 : i32
    %c0_i32 = arith.constant 0 : i32
    %c0_i32_0 = arith.constant 0 : i32
    return %1, %c0_i32 : i32, i32
  }
  func.func @transform_2(%arg0: i32, %arg1: i32, %arg2: memref<1xi32, #tpu.memory_space<smem>>) -> (i32, i32) {
    %c0_i32 = arith.constant 0 : i32
    %c0_i32_0 = arith.constant 0 : i32
    %c0_i32_1 = arith.constant 0 : i32
    return %c0_i32, %c0_i32_0 : i32, i32
  }
  func.func @transform_3(%arg0: i32, %arg1: i32, %arg2: memref<1xi32, #tpu.memory_space<smem>>) -> (i32, i32) {
    %c0_i32 = arith.constant 0 : i32
    %c0_i32_0 = arith.constant 0 : i32
    %c0_i32_1 = arith.constant 0 : i32
    return %c0_i32, %c0_i32_0 : i32, i32
  }
  func.func @transform_4(%arg0: i32, %arg1: i32, %arg2: memref<1xi32, #tpu.memory_space<smem>>) -> (i32, i32) {
    %c1_i32 = arith.constant 1 : i32
    %0 = arith.muli %arg0, %c1_i32 : i32
    %1 = arith.addi %0, %arg1 : i32
    %c0_i32 = arith.constant 0 : i32
    %c0_i32_0 = arith.constant 0 : i32
    return %1, %c0_i32 : i32, i32
  }
  func.func @transform_5(%arg0: i32, %arg1: i32, %arg2: memref<1xi32, #tpu.memory_space<smem>>) -> (i32, i32, i32) {
    %c0_i32 = arith.constant 0 : i32
    %c0_i32_0 = arith.constant 0 : i32
    %c0_i32_1 = arith.constant 0 : i32
    return %arg0, %c0_i32, %c0_i32_0 : i32, i32, i32
  }
  func.func @transform_6(%arg0: i32, %arg1: i32, %arg2: memref<1xi32, #tpu.memory_space<smem>>) -> (i32, i32, i32) {
    %c0_i32 = arith.constant 0 : i32
    %c0_i32_0 = arith.constant 0 : i32
    %c0_i32_1 = arith.constant 0 : i32
    return %arg0, %c0_i32, %c0_i32_0 : i32, i32, i32
  }
}

module attributes {stable_mosaic.version = 11 : i64} {
  func.func @_apply_kernel(%arg0: i32, %arg1: memref<8x128xf32, #tpu.memory_space<vmem>>, %arg2: memref<8x128xf32, #tpu.memory_space<vmem>>, %arg3: memref<1x128xf32, #tpu.memory_space<vmem>>, %arg4: memref<1x128xf32, #tpu.memory_space<vmem>>, %arg5: memref<8x128xf32, #tpu.memory_space<vmem>>) attributes {dimension_semantics = [#tpu.dimension_semantics<parallel>], iteration_bounds = array<i64: 2>, scalar_prefetch = 0 : i64, scratch_operands = 0 : i64, tpu.core_type = #tpu.core_type<tc>, window_params = [{transform_indices = @transform_0, window_bounds = array<i64: 8, 128>}, {transform_indices = @transform_1, window_bounds = array<i64: 8, 128>}, {pipeline_mode = #tpu.pipeline_mode<synchronous>, transform_indices = @transform_2, window_bounds = array<i64: 1, 128>}, {pipeline_mode = #tpu.pipeline_mode<synchronous>, transform_indices = @transform_3, window_bounds = array<i64: 1, 128>}, {transform_indices = @transform_4, window_bounds = array<i64: 8, 128>}]} {
    %c0 = arith.constant 0 : index
    %c0_0 = arith.constant 0 : index
    %0 = vector.load %arg2[%c0, %c0_0] : memref<8x128xf32, #tpu.memory_space<vmem>>, vector<8x128xf32>
    %c0_1 = arith.constant 0 : index
    %c0_2 = arith.constant 0 : index
    %1 = vector.load %arg3[%c0_1, %c0_2] : memref<1x128xf32, #tpu.memory_space<vmem>>, vector<1x128xf32>
    %2 = vector.broadcast %1 : vector<1x128xf32> to vector<8x128xf32>
    %3 = arith.mulf %0, %2 : vector<8x128xf32>
    %c0_3 = arith.constant 0 : index
    %c0_4 = arith.constant 0 : index
    %4 = vector.load %arg4[%c0_3, %c0_4] : memref<1x128xf32, #tpu.memory_space<vmem>>, vector<1x128xf32>
    %5 = vector.broadcast %4 : vector<1x128xf32> to vector<8x128xf32>
    %6 = arith.addf %3, %5 : vector<8x128xf32>
    %c0_5 = arith.constant 0 : index
    %c0_6 = arith.constant 0 : index
    %7 = vector.load %arg1[%c0_5, %c0_6] : memref<8x128xf32, #tpu.memory_space<vmem>>, vector<8x128xf32>
    %8 = arith.negf %6 : vector<8x128xf32>
    %9 = math.exp %8 : vector<8x128xf32>
    %cst = arith.constant 1.000000e+00 : f32
    %10 = vector.broadcast %cst : f32 to vector<8x128xf32>
    %11 = arith.addf %10, %9 : vector<8x128xf32>
    %12 = arith.divf %10, %11 : vector<8x128xf32>
    %13 = arith.mulf %6, %12 : vector<8x128xf32>
    %14 = arith.addf %7, %13 : vector<8x128xf32>
    %c0_7 = arith.constant 0 : index
    %c0_8 = arith.constant 0 : index
    %15 = vector.load %arg5[%c0_7, %c0_8] : memref<8x128xf32, #tpu.memory_space<vmem>>, vector<8x128xf32>
    tpu.vector_store %arg5[%c0_7, %c0_8], %14 {strides = array<i32>} : memref<8x128xf32, #tpu.memory_space<vmem>>, vector<8x128xf32>,
    return
  }
  func.func @transform_0(%arg0: i32) -> (i32, i32) {
    %c0_i32 = arith.constant 0 : i32
    %c0_i32_0 = arith.constant 0 : i32
    return %arg0, %c0_i32 : i32, i32
  }
  func.func @transform_1(%arg0: i32) -> (i32, i32) {
    %c0_i32 = arith.constant 0 : i32
    %c0_i32_0 = arith.constant 0 : i32
    return %arg0, %c0_i32 : i32, i32
  }
  func.func @transform_2(%arg0: i32) -> (i32, i32) {
    %c0_i32 = arith.constant 0 : i32
    %c0_i32_0 = arith.constant 0 : i32
    %c0_i32_1 = arith.constant 0 : i32
    return %c0_i32, %c0_i32_0 : i32, i32
  }
  func.func @transform_3(%arg0: i32) -> (i32, i32) {
    %c0_i32 = arith.constant 0 : i32
    %c0_i32_0 = arith.constant 0 : i32
    %c0_i32_1 = arith.constant 0 : i32
    return %c0_i32, %c0_i32_0 : i32, i32
  }
  func.func @transform_4(%arg0: i32) -> (i32, i32) {
    %c0_i32 = arith.constant 0 : i32
    %c0_i32_0 = arith.constant 0 : i32
    return %arg0, %c0_i32 : i32, i32
  }
}

</mosaic_0001>

<llo_original>
// kernel: edge_emb_net_forward.5
$region0: #{edge_emb_net_forward.5}
  #allocation0 [shape = 'u32[]', space=smem, size = 0x4, offset = 0x4, fixed_abs, tag = 'smem constant byte address 0x4 - core index']
  #allocation1 [shape = 'u32[72,128]{1,0:T(1,128)}', space=vmem, size = 0x9000, scoped, tag = 'internal scratch']
  %s0 = inlined_call_operand.vmem [shape: f32[16,128], index: 0, kind: input, shape index: {}, may-alias: {0,4}]
  %s1 = inlined_call_operand.vmem [shape: f32[16,128], index: 1, kind: input, shape index: {}]
  %s2 = inlined_call_operand.vmem [shape: f32[1,128], index: 2, kind: input, shape index: {}]
  %s3 = inlined_call_operand.vmem [shape: f32[1,128], index: 3, kind: input, shape index: {}]
  %s4 = inlined_call_operand.vmem [shape: f32[16,128], index: 4, kind: output, shape index: {}, may-alias: {0,4}]
  %s5 = sld [smem:[#allocation0]]
  $region49: #{edge_emb_net_forward.5} parent=0
    _
  %s7 = ssub.s32 1, %s5
  %s8 = scalar_select 0, %s7, %s5
  loop: start=0, step=1, limit=4
  $region2: #{edge_emb_net_forward.5} parent=0 // loop_pre_header
    _
  $region3: #{edge_emb_net_forward.5} parent=0 // loop_header
    %s10 = sphi 0, %s14
    %p11 = scmp.ge.s32.totalorder %s10, 4
    %s20 = sphi 0, %s22
    %s23 = sphi 0, %s20
    %s24 = sphi 0, %s23
    %s40 = sphi 0, %s24
    %s46 = sphi 0, %s48
    %s49 = sphi 0, %s46
    %s50 = sphi 0, %s49
    %s66 = sphi 0, %s50
    %s70 = sphi 0, %s70
    %s72 = sphi 0, %s70
    %s73 = sphi 0, %s72
    %s87 = sphi 0, %s73
    %s91 = sphi 0, %s91
    %s93 = sphi 0, %s91
    %s94 = sphi 0, %s93
    %s108 = sphi 0, %s94
    %s114 = sphi 0, %s116
    %s117 = sphi 0, %s114
    %s118 = sphi 0, %s117
    %s134 = sphi 0, %s118
  $region4: #{edge_emb_net_forward.5} parent=0 // loop_header_branch
    %13 = sbr.rel (%p11) target = $region8
  $region5: #{edge_emb_net_forward.5} parent=0 // loop_body
    %s15 = ssub.s32 %s10, 1
    %s16 = ssub.s32 %s10, 2
    %s17 = sadd.s32 %s10, 1
    %s18 = ssub.s32 %s10, %s17
    %p19 = scmp.eq.s32.totalorder %s18, 0
    %s21 = sadd.s32 %s20, 1
    %s22 = scalar_select %p19, %s20, %s21
    %p25 = pneg %p19
    %p26 = scmp.eq.s32.totalorder %s10, 1
    %p27 = por %p25, %p26
    %p28 = scmp.ne.s32.totalorder %s20, %s23
    %p29 = scmp.eq.s32.totalorder %s10, 0
    %p30 = por %p28, %p29
    %p31 = scmp.ne.s32.totalorder %s20, %s23
    %p32 = scmp.eq.s32.totalorder %s15, 1
    %p33 = por %p31, %p32
    %p34 = scmp.ne.s32.totalorder %s23, %s24
    %p35 = scmp.eq.s32.totalorder %s15, 0
    %p36 = por %p34, %p35
    %p37 = scmp.ne.s32.totalorder %s23, %s24
    %p38 = scmp.eq.s32.totalorder %s16, 1
    %p39 = por %p37, %p38
    %p41 = scmp.ne.s32.totalorder %s24, %s40
    %p42 = scmp.eq.s32.totalorder %s16, 0
    %p43 = por %p41, %p42
    %s44 = ssub.s32 %s10, %s17
    %p45 = scmp.eq.s32.totalorder %s44, 0
    %s47 = sadd.s32 %s46, 1
    %s48 = scalar_select %p45, %s46, %s47
    %p51 = pneg %p45
    %p52 = scmp.eq.s32.totalorder %s10, 1
    %p53 = por %p51, %p52
    %p54 = scmp.ne.s32.totalorder %s46, %s49
    %p55 = scmp.eq.s32.totalorder %s10, 0
    %p56 = por %p54, %p55
    %p57 = scmp.ne.s32.totalorder %s46, %s49
    %p58 = scmp.eq.s32.totalorder %s15, 1
    %p59 = por %p57, %p58
    %p60 = scmp.ne.s32.totalorder %s49, %s50
    %p61 = scmp.eq.s32.totalorder %s15, 0
    %p62 = por %p60, %p61
    %p63 = scmp.ne.s32.totalorder %s49, %s50
    %p64 = scmp.eq.s32.totalorder %s16, 1
    %p65 = por %p63, %p64
    %p67 = scmp.ne.s32.totalorder %s50, %s66
    %p68 = scmp.eq.s32.totalorder %s16, 0
    %p69 = por %p67, %p68
    %s71 = sadd.s32 %s70, 1
    %p74 = scmp.eq.s32.totalorder %s10, 1
    %p75 = scmp.ne.s32.totalorder %s70, %s72
    %p76 = scmp.eq.s32.totalorder %s10, 0
    %p77 = por %p75, %p76
    %p78 = scmp.ne.s32.totalorder %s70, %s72
    %p79 = scmp.eq.s32.totalorder %s15, 1
    %p80 = por %p78, %p79
    %p81 = scmp.ne.s32.totalorder %s72, %s73
    %p82 = scmp.eq.s32.totalorder %s15, 0
    %p83 = por %p81, %p82
    %p84 = scmp.ne.s32.totalorder %s72, %s73
    %p85 = scmp.eq.s32.totalorder %s16, 1
    %p86 = por %p84, %p85
    %p88 = scmp.ne.s32.totalorder %s73, %s87
    %p89 = scmp.eq.s32.totalorder %s16, 0
    %p90 = por %p88, %p89
    %s92 = sadd.s32 %s91, 1
    %p95 = scmp.eq.s32.totalorder %s10, 1
    %p96 = scmp.ne.s32.totalorder %s91, %s93
    %p97 = scmp.eq.s32.totalorder %s10, 0
    %p98 = por %p96, %p97
    %p99 = scmp.ne.s32.totalorder %s91, %s93
    %p100 = scmp.eq.s32.totalorder %s15, 1
    %p101 = por %p99, %p100
    %p102 = scmp.ne.s32.totalorder %s93, %s94
    %p103 = scmp.eq.s32.totalorder %s15, 0
    %p104 = por %p102, %p103
    %p105 = scmp.ne.s32.totalorder %s93, %s94
    %p106 = scmp.eq.s32.totalorder %s16, 1
    %p107 = por %p105, %p106
    %p109 = scmp.ne.s32.totalorder %s94, %s108
    %p110 = scmp.eq.s32.totalorder %s16, 0
    %p111 = por %p109, %p110
    %s112 = ssub.s32 %s10, %s17
    %p113 = scmp.eq.s32.totalorder %s112, 0
    %s115 = sadd.s32 %s114, 1
    %s116 = scalar_select %p113, %s114, %s115
    %p119 = pneg %p113
    %p120 = scmp.eq.s32.totalorder %s10, 1
    %p121 = por %p119, %p120
    %p122 = scmp.ne.s32.totalorder %s114, %s117
    %p123 = scmp.eq.s32.totalorder %s10, 0
    %p124 = por %p122, %p123
    %p125 = scmp.ne.s32.totalorder %s114, %s117
    %p126 = scmp.eq.s32.totalorder %s15, 1
    %p127 = por %p125, %p126
    %p128 = scmp.ne.s32.totalorder %s117, %s118
    %p129 = scmp.eq.s32.totalorder %s15, 0
    %p130 = por %p128, %p129
    %p131 = scmp.ne.s32.totalorder %s117, %s118
    %p132 = scmp.eq.s32.totalorder %s16, 1
    %p133 = por %p131, %p132
    %p135 = scmp.ne.s32.totalorder %s118, %s134
    %p136 = scmp.eq.s32.totalorder %s16, 0
    %p137 = por %p135, %p136
    %p138 = scmp.le.s32.totalorder 1, %s10
    %p139 = scmp.lt.s32.totalorder %s10, 3
    %p140 = pnand %p138, %p139
    %p141 = pneg %p140
    // Predicated region
    $region9: #{edge_emb_net_forward.5} parent=5 // pred_check
      _
    $region10: #{edge_emb_net_forward.5} parent=5 // pred_check_branch
      %143 = sbr.rel (%p140) target = $region12
    $region11: #{edge_emb_net_forward.5} parent=5 // pred_region
      %s144 = ssub.s32 %s10, 1
      // Predicated region
      $region13: #{edge_emb_net_forward.5} parent=11 // pred_check
        %p145 = pneg %p83
      $region14: #{edge_emb_net_forward.5} parent=11 // pred_check_branch
        %147 = sbr.rel (%p145) target = $region16
      $region15: #{edge_emb_net_forward.5} parent=11 // pred_region
        _
      $region16: #{edge_emb_net_forward.5} parent=11 // pred_fallthru
        _
      // Predicated region
      $region17: #{edge_emb_net_forward.5} parent=11 // pred_check
        %p148 = pneg %p104
      $region18: #{edge_emb_net_forward.5} parent=11 // pred_check_branch
        %150 = sbr.rel (%p148) target = $region20
      $region19: #{edge_emb_net_forward.5} parent=11 // pred_region
        _
      $region20: #{edge_emb_net_forward.5} parent=11 // pred_fallthru
        _
    $region12: #{edge_emb_net_forward.5} parent=5 // pred_fallthru
      _
    %p151 = scmp.lt.s32.totalorder %s10, 2
    // Predicated region
    $region21: #{edge_emb_net_forward.5} parent=5 // pred_check
      %p152 = pneg %p151
    $region22: #{edge_emb_net_forward.5} parent=5 // pred_check_branch
      %154 = sbr.rel (%p152) target = $region24
    $region23: #{edge_emb_net_forward.5} parent=5 // pred_region
      // Predicated region
      $region25: #{edge_emb_net_forward.5} parent=23 // pred_check
        %p155 = pneg %p30
      $region26: #{edge_emb_net_forward.5} parent=23 // pred_check_branch
        %157 = sbr.rel (%p155) target = $region28
      $region27: #{edge_emb_net_forward.5} parent=23 // pred_region
        %p158 = scmp.lt.s32.totalorder %s10, 1
        %s159 = scalar_select %p158, %s10, 1
        %s160 = smul.addr %s159, 8
        %s161 = scalar_lea.vmem %s0, %s160
      $region28: #{edge_emb_net_forward.5} parent=23 // pred_fallthru
        _
      // Predicated region
      $region29: #{edge_emb_net_forward.5} parent=23 // pred_check
        %p162 = pneg %p56
      $region30: #{edge_emb_net_forward.5} parent=23 // pred_check_branch
        %164 = sbr.rel (%p162) target = $region32
      $region31: #{edge_emb_net_forward.5} parent=23 // pred_region
        %p165 = scmp.lt.s32.totalorder %s10, 1
        %s166 = scalar_select %p165, %s10, 1
        %s167 = smul.addr %s166, 8
        %s168 = scalar_lea.vmem %s1, %s167
      $region32: #{edge_emb_net_forward.5} parent=23 // pred_fallthru
        _
    $region24: #{edge_emb_net_forward.5} parent=5 // pred_fallthru
      _
    %p169 = scmp.le.s32.totalorder 1, %s10
    %p170 = scmp.lt.s32.totalorder %s10, 3
    %p171 = pnand %p169, %p170
    %p172 = pneg %p171
    // Predicated region
    $region33: #{edge_emb_net_forward.5} parent=5 // pred_check
      _
    $region34: #{edge_emb_net_forward.5} parent=5 // pred_check_branch
      %174 = sbr.rel (%p171) target = $region36
    $region35: #{edge_emb_net_forward.5} parent=5 // pred_region
      %s175 = ssub.s32 %s10, 1
      %p176 = scmp.lt.s32.totalorder %s15, 1
      %s177 = scalar_select %p176, %s15, 1
      %s178 = smul.addr %s177, 8
      %s179 = scalar_lea.vmem %s0, %s178
      %p180 = pneg %p36
      %p181 = pneg %p33
      %p182 = scmp.lt.s32.totalorder %s15, 1
      %s183 = scalar_select %p182, %s15, 1
      %s184 = smul.addr %s183, 8
      %s185 = scalar_lea.vmem %s1, %s184
      %p186 = pneg %p62
      %p187 = pneg %p59
      %p188 = pneg %p83
      %p189 = pneg %p80
      %p190 = pneg %p104
      %p191 = pneg %p101
      %p192 = pneg %p130
      %p193 = pneg %p127
      %p194 = scmp.lt.s32.totalorder %s15, 1
      %s195 = scalar_select %p194, %s15, 1
      %s196 = smul.addr %s195, 8
      %s197 = scalar_lea.vmem %s4, %s196
      %p198 = scmp.lt.s32.totalorder %s15, 1
      %s199 = scalar_select %p198, %s15, 1
      %s200 = smul.addr %s199, 8
      %s201 = scalar_lea.vmem %s0, %s200
      %p202 = scmp.lt.s32.totalorder %s15, 1
      %s203 = scalar_select %p202, %s15, 1
      %s204 = smul.addr %s203, 8
      %s205 = scalar_lea.vmem %s1, %s204
      %p206 = scmp.lt.s32.totalorder %s15, 1
      %s207 = scalar_select %p206, %s15, 1
      %s208 = smul.addr %s207, 8
      %s209 = scalar_lea.vmem %s4, %s208
      %v210 = vld [vmem:[%s205] sm:$0xff]
      %v211 = vld [vmem:[%s2] sm:$0x1]
      %v213 = vperm.slane %v211, 0
      %v215 = vmul.f32 %v210, %v213
      %v216 = vld [vmem:[%s3] sm:$0x1]
      %v218 = vperm.slane %v216, 0
      %v220 = vadd.f32 %v215, %v218
      %v221 = vld [vmem:[%s201] sm:$0xff]
      %v222 = vxor.u32 %v220, 2147483648
      %v223 = vmul.f32 %v222, 1.442695
      %v224 = vpow.pop %v223
      %v225 = vadd.f32 %v224, 1.0
      %v226 = vrcp.pop %v225
      %v227 = vmul.f32 %v225, %v226
      %v228 = vsub.f32 1.0, %v227
      %v229 = vmul.f32 %v226, %v228
      %v230 = vadd.f32 %v226, %v229
      %vm231 = vweird.f32 %v225
      %vm232 = vweird.f32 %v226
      %vm233 = vmor %vm231, %vm232
      %v234 = vsel %vm233, %v226, %v230
      %v235 = vand.u32 2147483647, %v225
      %vm236 = vcmp.eq.f32.partialorder %v235, 8.507059e+37
      %v237 = vand.u32 %v225, 2147483648
      %v238 = vor.u32 1.1754944e-38, %v237
      %v239 = vsel %vm236, %v238, %v234
      %v240 = vmul.f32 1.0, %v239
      %v241 = vmul.f32 %v220, %v240
      %v242 = vadd.f32 %v221, %v241
      %243 = vst [vmem:[%s209] sm:$0xff] %v242
      %p244 = scmp.lt.s32.totalorder %s15, 1
      %s245 = scalar_select %p244, %s15, 1
      %s246 = smul.addr %s245, 8
      %s247 = scalar_lea.vmem %s4, %s246
      // Predicated region
      $region37: #{edge_emb_net_forward.5} parent=35 // pred_check
        %p248 = pneg %p127
      $region38: #{edge_emb_net_forward.5} parent=35 // pred_check_branch
        %250 = sbr.rel (%p248) target = $region40
      $region39: #{edge_emb_net_forward.5} parent=35 // pred_region
        _
      $region40: #{edge_emb_net_forward.5} parent=35 // pred_fallthru
        _
    $region36: #{edge_emb_net_forward.5} parent=5 // pred_fallthru
      _
    %p251 = scmp.le.s32.totalorder 2, %s10
    // Predicated region
    $region41: #{edge_emb_net_forward.5} parent=5 // pred_check
      %p252 = pneg %p251
    $region42: #{edge_emb_net_forward.5} parent=5 // pred_check_branch
      %254 = sbr.rel (%p252) target = $region44
    $region43: #{edge_emb_net_forward.5} parent=5 // pred_region
      %s255 = ssub.s32 %s10, 2
      // Predicated region
      $region45: #{edge_emb_net_forward.5} parent=43 // pred_check
        %p256 = pneg %p133
      $region46: #{edge_emb_net_forward.5} parent=43 // pred_check_branch
        %258 = sbr.rel (%p256) target = $region48
      $region47: #{edge_emb_net_forward.5} parent=43 // pred_region
        %p259 = scmp.lt.s32.totalorder %s16, 1
        %s260 = scalar_select %p259, %s16, 1
        %s261 = smul.addr %s260, 8
        %s262 = scalar_lea.vmem %s4, %s261
      $region48: #{edge_emb_net_forward.5} parent=43 // pred_fallthru
        _
    $region44: #{edge_emb_net_forward.5} parent=5 // pred_fallthru
      _
  $region6: #{edge_emb_net_forward.5} parent=0 // loop_footer
    %s14 = sadd.s32 1, %s10
  $region7: #{edge_emb_net_forward.5} parent=0 // loop_footer_branch
    %9 = sbr.rel target = $region3
  $region8: #{edge_emb_net_forward.5} parent=0 // loop_exit
    _

// kernel: edge_emb_net_forward.3
$region0: #{edge_emb_net_forward.3}
  #allocation0 [shape = 'u32[]', space=smem, size = 0x4, offset = 0x4, fixed_abs, tag = 'smem constant byte address 0x4 - core index']
  #allocation1 [shape = 'u32[72,128]{1,0:T(1,128)}', space=vmem, size = 0x9000, scoped, tag = 'internal scratch']
  %s0 = inlined_call_operand.vmem [shape: f32[16,32], index: 0, kind: input, shape index: {}]
  %s1 = inlined_call_operand.vmem [shape: f32[32,64], index: 1, kind: input, shape index: {}]
  %s2 = inlined_call_operand.vmem [shape: f32[1,64], index: 2, kind: input, shape index: {}]
  %s3 = inlined_call_operand.vmem [shape: f32[16,64], index: 3, kind: output, shape index: {}]
  %s4 = sld [smem:[#allocation0]]
  $region22: #{edge_emb_net_forward.3} parent=0
    _
  %s6 = ssub.s32 1, %s4
  %s7 = scalar_select 0, %s6, %s4
  // Predicated region
  $region2: #{edge_emb_net_forward.3} parent=0 // pred_check
    _
  $region3: #{edge_emb_net_forward.3} parent=0 // pred_check_branch
    %9 = sbr.rel (0) target = $region5
  $region4: #{edge_emb_net_forward.3} parent=0 // pred_region
    _
  $region5: #{edge_emb_net_forward.3} parent=0 // pred_fallthru
    _
  // Predicated region
  $region6: #{edge_emb_net_forward.3} parent=0 // pred_check
    _
  $region7: #{edge_emb_net_forward.3} parent=0 // pred_check_branch
    %11 = sbr.rel (0) target = $region9
  $region8: #{edge_emb_net_forward.3} parent=0 // pred_region
    _
  $region9: #{edge_emb_net_forward.3} parent=0 // pred_fallthru
    _
  // Predicated region
  $region10: #{edge_emb_net_forward.3} parent=0 // pred_check
    _
  $region11: #{edge_emb_net_forward.3} parent=0 // pred_check_branch
    %13 = sbr.rel (0) target = $region13
  $region12: #{edge_emb_net_forward.3} parent=0 // pred_region
    _
  $region13: #{edge_emb_net_forward.3} parent=0 // pred_fallthru
    _
  %v14 = vld [vmem:[%s0] sm:$0xff]
  %v15 = vld [vmem:[%s0 + $0x8] sm:$0xff]
  %v16 = vld [vmem:[%s1] sm:$0xff]
  %v17 = vld [vmem:[%s1 + $0x8] sm:$0xff]
  %v18 = vld [vmem:[%s1 + $0x10] sm:$0xff]
  %v19 = vld [vmem:[%s1 + $0x18] sm:$0xff]
  %v20 = vld [vmem:[%s2] sm:$0x1]
  %v22 = vperm.slane %v20, 0
  %vm24 = vcmask 261120
  %v26 = vsel %vm24, %v14, 0
  %v29 = vsel %vm24, %v15, 0
  %31 = vmatpush.msra.mxu0 0.0
  %32 = vmatpush.msra.mxu0 0.0
  %33 = vmatpush.msra.mxu0 0.0
  %34 = vmatpush.msra.mxu0 0.0
  %35 = vmatpush.msra.mxu0 0.0
  %36 = vmatpush.msra.mxu0 0.0
  %37 = vmatpush.msra.mxu0 0.0
  %38 = vmatpush.msra.mxu0 0.0
  %39 = vmatpush.msra.mxu0 0.0
  %40 = vmatpush.msra.mxu0 0.0
  %41 = vmatpush.msra.mxu0 0.0
  %42 = vmatpush.msra.mxu0 0.0
  %43 = vmatpush.msra.mxu0 %v19
  %44 = vmatpush.msra.mxu0 %v18
  %45 = vmatpush.msra.mxu0 %v17
  %46 = vmatpush.msra.mxu0 %v16
  %47 = vmatmul.f32.gmra.mxu0 %v26
  %v48 = vpop.f32.mrf.mxu0
  %v49 = vadd.f32 %v22, %v48
  %50 = vmatmul.f32.gmra.mxu0 %v29
  %v51 = vpop.f32.mrf.mxu0
  %v52 = vadd.f32 %v22, %v51
  %53 = vdwg.mxu0
  %vm54 = vcmask 523264
  %55 = vst.msk [vmem:[%s3] sm:$0xff] %vm54, %v49
  %56 = vst.msk [vmem:[%s3 + $0x8] sm:$0xff] %vm54, %v52
  // Predicated region
  $region14: #{edge_emb_net_forward.3} parent=0 // pred_check
    _
  $region15: #{edge_emb_net_forward.3} parent=0 // pred_check_branch
    %58 = sbr.rel (0) target = $region17
  $region16: #{edge_emb_net_forward.3} parent=0 // pred_region
    _
  $region17: #{edge_emb_net_forward.3} parent=0 // pred_fallthru
    _
  // Predicated region
  $region18: #{edge_emb_net_forward.3} parent=0 // pred_check
    _
  $region19: #{edge_emb_net_forward.3} parent=0 // pred_check_branch
    %60 = sbr.rel (0) target = $region21
  $region20: #{edge_emb_net_forward.3} parent=0 // pred_region
    _
  $region21: #{edge_emb_net_forward.3} parent=0 // pred_fallthru
    _

// kernel: edge_emb_net_forward.4
$region0: #{edge_emb_net_forward.4}
  #allocation0 [shape = 'u32[]', space=smem, size = 0x4, offset = 0x4, fixed_abs, tag = 'smem constant byte address 0x4 - core index']
  #allocation1 [shape = 'u32[72,128]{1,0:T(1,128)}', space=vmem, size = 0x9000, scoped, tag = 'internal scratch']
  #allocation2 [shape = 'f32[1,32]{1,0:T(1,128)}', space=vmem, size = 0x200, scoped, tag = 'scratch operand']
  #allocation3 [shape = 'f32[1,32]{1,0:T(1,128)}', space=vmem, size = 0x200, scoped, tag = 'scratch operand']
  #allocation4 [shape = 's32[1]{0}', space=sflag, size = 0x4, scoped, tag = 'scoped memory for edge_emb_net_forward.4']
  #allocation5 [shape = 's32[1]{0:T(128)S(6)}', space=smem, size = 0x200, scoped, tag = 'prefetched SMEM operand 0']
  %s0 = inlined_call_operand.<no memory space> [shape: s32[1], index: 0, kind: input, shape index: {}]
  %s1 = inlined_call_operand.vmem [shape: f32[64,32], index: 1, kind: input, shape index: {}]
  %s2 = inlined_call_operand.vmem [shape: f32[64,32], index: 2, kind: input, shape index: {}]
  %s3 = inlined_call_operand.vmem [shape: f32[32,32], index: 3, kind: input, shape index: {}]
  %s4 = inlined_call_operand.vmem [shape: f32[1,32], index: 4, kind: input, shape index: {}]
  %s5 = inlined_call_operand.vmem [shape: f32[64,32], index: 5, kind: output, shape index: {0}]
  %s6 = inlined_call_operand.vmem [shape: f32[2,8,32], index: 6, kind: output, shape index: {1}]
  %s7 = inlined_call_operand.vmem [shape: f32[2,8,32], index: 7, kind: output, shape index: {2}]
  %8 = xla_tuple %s5, %s6, %s7
  %s9 = sld [smem:[#allocation0]]
  $region73: #{edge_emb_net_forward.4} parent=0
    _
  %s11 = ssub.s32 1, %s9
  %s12 = scalar_select 0, %s11, %s9
  %13 = sst [smem:[#allocation5]] %s0
  loop: start=0, step=1, limit=4
  $region2: #{edge_emb_net_forward.4} parent=0 // loop_pre_header
    _
  $region3: #{edge_emb_net_forward.4} parent=0 // loop_header
    %s15 = sphi 0, %s19
    %p16 = scmp.ge.s32.totalorder %s15, 4
    %s22 = sphi 0, %s34
    %s23 = sphi 0, %s30
    %s24 = sphi 0, %s22
    %s25 = sphi 0, %s23
    %s26 = sphi 0, %s24
    %s27 = sphi 0, %s25
    %s39 = sphi 0, %s41
    %s42 = sphi 0, %s39
    %s43 = sphi 0, %s42
    %s59 = sphi 0, %s43
    %s67 = sphi 0, %s69
    %s70 = sphi 0, %s67
    %s71 = sphi 0, %s70
    %s87 = sphi 0, %s71
    %s91 = sphi 0, %s91
    %s93 = sphi 0, %s91
    %s94 = sphi 0, %s93
    %s108 = sphi 0, %s94
    %s112 = sphi 0, %s112
    %s114 = sphi 0, %s112
    %s115 = sphi 0, %s114
    %s129 = sphi 0, %s115
    %s137 = sphi 0, %s139
    %s140 = sphi 0, %s137
    %s141 = sphi 0, %s140
    %s157 = sphi 0, %s141
    %s163 = sphi 0, %s165
    %s166 = sphi 0, %s163
    %s167 = sphi 0, %s166
    %s183 = sphi 0, %s167
    %s189 = sphi 0, %s191
    %s192 = sphi 0, %s189
    %s193 = sphi 0, %s192
    %s209 = sphi 0, %s193
  $region4: #{edge_emb_net_forward.4} parent=0 // loop_header_branch
    %18 = sbr.rel (%p16) target = $region8
  $region5: #{edge_emb_net_forward.4} parent=0 // loop_body
    %s20 = ssub.s32 %s15, 1
    %s21 = ssub.s32 %s15, 2
    %s28 = sadd.s32 1, %s23
    %p29 = scmp.ge.s32.totalorder %s28, 1
    %s30 = scalar_select %p29, 0, %s28
    %s31 = sadd.s32 1, %s22
    %s32 = scalar_select %p29, %s31, %s22
    %p33 = scmp.ge.s32.totalorder %s32, 2
    %s34 = scalar_select %p33, 0, %s32
    %s35 = sadd.s32 %s22, %s23
    %s36 = sadd.s32 %s34, %s30
    %s37 = ssub.s32 %s35, %s36
    %p38 = scmp.eq.s32.totalorder %s37, 0
    %s40 = sadd.s32 %s39, 1
    %s41 = scalar_select %p38, %s39, %s40
    %p44 = pneg %p38
    %p45 = scmp.eq.s32.totalorder %s15, 1
    %p46 = por %p44, %p45
    %p47 = scmp.ne.s32.totalorder %s39, %s42
    %p48 = scmp.eq.s32.totalorder %s15, 0
    %p49 = por %p47, %p48
    %p50 = scmp.ne.s32.totalorder %s39, %s42
    %p51 = scmp.eq.s32.totalorder %s20, 1
    %p52 = por %p50, %p51
    %p53 = scmp.ne.s32.totalorder %s42, %s43
    %p54 = scmp.eq.s32.totalorder %s20, 0
    %p55 = por %p53, %p54
    %p56 = scmp.ne.s32.totalorder %s42, %s43
    %p57 = scmp.eq.s32.totalorder %s21, 1
    %p58 = por %p56, %p57
    %p60 = scmp.ne.s32.totalorder %s43, %s59
    %p61 = scmp.eq.s32.totalorder %s21, 0
    %p62 = por %p60, %p61
    %s63 = sadd.s32 %s22, %s23
    %s64 = sadd.s32 %s34, %s30
    %s65 = ssub.s32 %s63, %s64
    %p66 = scmp.eq.s32.totalorder %s65, 0
    %s68 = sadd.s32 %s67, 1
    %s69 = scalar_select %p66, %s67, %s68
    %p72 = pneg %p66
    %p73 = scmp.eq.s32.totalorder %s15, 1
    %p74 = por %p72, %p73
    %p75 = scmp.ne.s32.totalorder %s67, %s70
    %p76 = scmp.eq.s32.totalorder %s15, 0
    %p77 = por %p75, %p76
    %p78 = scmp.ne.s32.totalorder %s67, %s70
    %p79 = scmp.eq.s32.totalorder %s20, 1
    %p80 = por %p78, %p79
    %p81 = scmp.ne.s32.totalorder %s70, %s71
    %p82 = scmp.eq.s32.totalorder %s20, 0
    %p83 = por %p81, %p82
    %p84 = scmp.ne.s32.totalorder %s70, %s71
    %p85 = scmp.eq.s32.totalorder %s21, 1
    %p86 = por %p84, %p85
    %p88 = scmp.ne.s32.totalorder %s71, %s87
    %p89 = scmp.eq.s32.totalorder %s21, 0
    %p90 = por %p88, %p89
    %s92 = sadd.s32 %s91, 1
    %p95 = scmp.eq.s32.totalorder %s15, 1
    %p96 = scmp.ne.s32.totalorder %s91, %s93
    %p97 = scmp.eq.s32.totalorder %s15, 0
    %p98 = por %p96, %p97
    %p99 = scmp.ne.s32.totalorder %s91, %s93
    %p100 = scmp.eq.s32.totalorder %s20, 1
    %p101 = por %p99, %p100
    %p102 = scmp.ne.s32.totalorder %s93, %s94
    %p103 = scmp.eq.s32.totalorder %s20, 0
    %p104 = por %p102, %p103
    %p105 = scmp.ne.s32.totalorder %s93, %s94
    %p106 = scmp.eq.s32.totalorder %s21, 1
    %p107 = por %p105, %p106
    %p109 = scmp.ne.s32.totalorder %s94, %s108
    %p110 = scmp.eq.s32.totalorder %s21, 0
    %p111 = por %p109, %p110
    %s113 = sadd.s32 %s112, 1
    %p116 = scmp.eq.s32.totalorder %s15, 1
    %p117 = scmp.ne.s32.totalorder %s112, %s114
    %p118 = scmp.eq.s32.totalorder %s15, 0
    %p119 = por %p117, %p118
    %p120 = scmp.ne.s32.totalorder %s112, %s114
    %p121 = scmp.eq.s32.totalorder %s20, 1
    %p122 = por %p120, %p121
    %p123 = scmp.ne.s32.totalorder %s114, %s115
    %p124 = scmp.eq.s32.totalorder %s20, 0
    %p125 = por %p123, %p124
    %p126 = scmp.ne.s32.totalorder %s114, %s115
    %p127 = scmp.eq.s32.totalorder %s21, 1
    %p128 = por %p126, %p127
    %p130 = scmp.ne.s32.totalorder %s115, %s129
    %p131 = scmp.eq.s32.totalorder %s21, 0
    %p132 = por %p130, %p131
    %s133 = sadd.s32 %s22, %s23
    %s134 = sadd.s32 %s34, %s30
    %s135 = ssub.s32 %s133, %s134
    %p136 = scmp.eq.s32.totalorder %s135, 0
    %s138 = sadd.s32 %s137, 1
    %s139 = scalar_select %p136, %s137, %s138
    %p142 = pneg %p136
    %p143 = scmp.eq.s32.totalorder %s15, 1
    %p144 = por %p142, %p143
    %p145 = scmp.ne.s32.totalorder %s137, %s140
    %p146 = scmp.eq.s32.totalorder %s15, 0
    %p147 = por %p145, %p146
    %p148 = scmp.ne.s32.totalorder %s137, %s140
    %p149 = scmp.eq.s32.totalorder %s20, 1
    %p150 = por %p148, %p149
    %p151 = scmp.ne.s32.totalorder %s140, %s141
    %p152 = scmp.eq.s32.totalorder %s20, 0
    %p153 = por %p151, %p152
    %p154 = scmp.ne.s32.totalorder %s140, %s141
    %p155 = scmp.eq.s32.totalorder %s21, 1
    %p156 = por %p154, %p155
    %p158 = scmp.ne.s32.totalorder %s141, %s157
    %p159 = scmp.eq.s32.totalorder %s21, 0
    %p160 = por %p158, %p159
    %s161 = ssub.s32 %s22, %s34
    %p162 = scmp.eq.s32.totalorder %s161, 0
    %s164 = sadd.s32 %s163, 1
    %s165 = scalar_select %p162, %s163, %s164
    %p168 = pneg %p162
    %p169 = scmp.eq.s32.totalorder %s15, 1
    %p170 = por %p168, %p169
    %p171 = scmp.ne.s32.totalorder %s163, %s166
    %p172 = scmp.eq.s32.totalorder %s15, 0
    %p173 = por %p171, %p172
    %p174 = scmp.ne.s32.totalorder %s163, %s166
    %p175 = scmp.eq.s32.totalorder %s20, 1
    %p176 = por %p174, %p175
    %p177 = scmp.ne.s32.totalorder %s166, %s167
    %p178 = scmp.eq.s32.totalorder %s20, 0
    %p179 = por %p177, %p178
    %p180 = scmp.ne.s32.totalorder %s166, %s167
    %p181 = scmp.eq.s32.totalorder %s21, 1
    %p182 = por %p180, %p181
    %p184 = scmp.ne.s32.totalorder %s167, %s183
    %p185 = scmp.eq.s32.totalorder %s21, 0
    %p186 = por %p184, %p185
    %s187 = ssub.s32 %s22, %s34
    %p188 = scmp.eq.s32.totalorder %s187, 0
    %s190 = sadd.s32 %s189, 1
    %s191 = scalar_select %p188, %s189, %s190
    %p194 = pneg %p188
    %p195 = scmp.eq.s32.totalorder %s15, 1
    %p196 = por %p194, %p195
    %p197 = scmp.ne.s32.totalorder %s189, %s192
    %p198 = scmp.eq.s32.totalorder %s15, 0
    %p199 = por %p197, %p198
    %p200 = scmp.ne.s32.totalorder %s189, %s192
    %p201 = scmp.eq.s32.totalorder %s20, 1
    %p202 = por %p200, %p201
    %p203 = scmp.ne.s32.totalorder %s192, %s193
    %p204 = scmp.eq.s32.totalorder %s20, 0
    %p205 = por %p203, %p204
    %p206 = scmp.ne.s32.totalorder %s192, %s193
    %p207 = scmp.eq.s32.totalorder %s21, 1
    %p208 = por %p206, %p207
    %p210 = scmp.ne.s32.totalorder %s193, %s209
    %p211 = scmp.eq.s32.totalorder %s21, 0
    %p212 = por %p210, %p211
    %p213 = scmp.le.s32.totalorder 1, %s15
    %p214 = scmp.lt.s32.totalorder %s15, 3
    %p215 = pnand %p213, %p214
    %p216 = pneg %p215
    // Predicated region
    $region9: #{edge_emb_net_forward.4} parent=5 // pred_check
      _
    $region10: #{edge_emb_net_forward.4} parent=5 // pred_check_branch
      %218 = sbr.rel (%p215) target = $region12
    $region11: #{edge_emb_net_forward.4} parent=5 // pred_region
      %s219 = ssub.s32 %s15, 1
      // Predicated region
      $region13: #{edge_emb_net_forward.4} parent=11 // pred_check
        %p220 = pneg %p104
      $region14: #{edge_emb_net_forward.4} parent=11 // pred_check_branch
        %222 = sbr.rel (%p220) target = $region16
      $region15: #{edge_emb_net_forward.4} parent=11 // pred_region
        _
      $region16: #{edge_emb_net_forward.4} parent=11 // pred_fallthru
        _
      // Predicated region
      $region17: #{edge_emb_net_forward.4} parent=11 // pred_check
        %p223 = pneg %p125
      $region18: #{edge_emb_net_forward.4} parent=11 // pred_check_branch
        %225 = sbr.rel (%p223) target = $region20
      $region19: #{edge_emb_net_forward.4} parent=11 // pred_region
        _
      $region20: #{edge_emb_net_forward.4} parent=11 // pred_fallthru
        _
    $region12: #{edge_emb_net_forward.4} parent=5 // pred_fallthru
      _
    %p226 = scmp.lt.s32.totalorder %s15, 2
    // Predicated region
    $region21: #{edge_emb_net_forward.4} parent=5 // pred_check
      %p227 = pneg %p226
    $region22: #{edge_emb_net_forward.4} parent=5 // pred_check_branch
      %229 = sbr.rel (%p227) target = $region24
    $region23: #{edge_emb_net_forward.4} parent=5 // pred_region
      // Predicated region
      $region25: #{edge_emb_net_forward.4} parent=23 // pred_check
        %p230 = pneg %p49
      $region26: #{edge_emb_net_forward.4} parent=23 // pred_check_branch
        %232 = sbr.rel (%p230) target = $region28
      $region27: #{edge_emb_net_forward.4} parent=23 // pred_region
        %s233 = sadd.s32 %s22, %s23
        %s234 = smul.u32 4, %s233
        %p235 = scmp.lt.s32.totalorder %s234, 7
        %s236 = scalar_select %p235, %s234, 7
        %s237 = smul.addr %s236, 8
        %s238 = scalar_lea.vmem %s1, %s237
        %s239 = sadd.s32 %s22, %s23
        %s240 = smul.u32 4, %s239
      $region28: #{edge_emb_net_forward.4} parent=23 // pred_fallthru
        _
      // Predicated region
      $region29: #{edge_emb_net_forward.4} parent=23 // pred_check
        %p241 = pneg %p77
      $region30: #{edge_emb_net_forward.4} parent=23 // pred_check_branch
        %243 = sbr.rel (%p241) target = $region32
      $region31: #{edge_emb_net_forward.4} parent=23 // pred_region
        %s244 = sadd.s32 %s22, %s23
        %s245 = smul.u32 4, %s244
        %p246 = scmp.lt.s32.totalorder %s245, 7
        %s247 = scalar_select %p246, %s245, 7
        %s248 = smul.addr %s247, 8
        %s249 = scalar_lea.vmem %s2, %s248
        %s250 = sadd.s32 %s22, %s23
        %s251 = smul.u32 4, %s250
      $region32: #{edge_emb_net_forward.4} parent=23 // pred_fallthru
        _
    $region24: #{edge_emb_net_forward.4} parent=5 // pred_fallthru
      _
    %p252 = scmp.le.s32.totalorder 1, %s15
    %p253 = scmp.lt.s32.totalorder %s15, 3
    %p254 = pnand %p252, %p253
    %p255 = pneg %p254
    // Predicated region
    $region33: #{edge_emb_net_forward.4} parent=5 // pred_check
      _
    $region34: #{edge_emb_net_forward.4} parent=5 // pred_check_branch
      %257 = sbr.rel (%p254) target = $region36
    $region35: #{edge_emb_net_forward.4} parent=5 // pred_region
      %s258 = ssub.s32 %s15, 1
      %s259 = sadd.s32 %s24, %s25
      %s260 = smul.u32 4, %s259
      %p261 = scmp.lt.s32.totalorder %s260, 7
      %s262 = scalar_select %p261, %s260, 7
      %s263 = smul.addr %s262, 8
      %s264 = scalar_lea.vmem %s1, %s263
      %p265 = pneg %p55
      %p266 = pneg %p52
      %s267 = sadd.s32 %s24, %s25
      %s268 = smul.u32 4, %s267
      %p269 = scmp.lt.s32.totalorder %s268, 7
      %s270 = scalar_select %p269, %s268, 7
      %s271 = smul.addr %s270, 8
      %s272 = scalar_lea.vmem %s2, %s271
      %p273 = pneg %p83
      %p274 = pneg %p80
      %p275 = pneg %p104
      %p276 = pneg %p101
      %p277 = pneg %p125
      %p278 = pneg %p122
      %p279 = pneg %p153
      %p280 = pneg %p150
      %s281 = sadd.s32 %s24, %s25
      %s282 = smul.u32 4, %s281
      %p283 = scmp.lt.s32.totalorder %s282, 7
      %s284 = scalar_select %p283, %s282, 7
      %s285 = smul.addr %s284, 8
      %s286 = scalar_lea.vmem %s5, %s285
      %p287 = pneg %p179
      %p288 = pneg %p176
      %p289 = scmp.lt.s32.totalorder %s24, 1
      %s290 = scalar_select %p289, %s24, 1
      %s291 = smul.addr %s290, 8
      %s292 = scalar_lea.vmem %s6, %s291
      %p293 = pneg %p205
      %p294 = pneg %p202
      %p295 = scmp.lt.s32.totalorder %s24, 1
      %s296 = scalar_select %p295, %s24, 1
      %s297 = smul.addr %s296, 8
      %s298 = scalar_lea.vmem %s7, %s297
      %s299 = sadd.s32 %s24, %s25
      %s300 = smul.u32 4, %s299
      %p301 = scmp.lt.s32.totalorder %s300, 7
      %s302 = scalar_select %p301, %s300, 7
      %s303 = smul.addr %s302, 8
      %s304 = scalar_lea.vmem %s1, %s303
      %s305 = sadd.s32 %s24, %s25
      %s306 = smul.u32 4, %s305
      %s307 = sadd.s32 %s24, %s25
      %s308 = smul.u32 4, %s307
      %p309 = scmp.lt.s32.totalorder %s308, 7
      %s310 = scalar_select %p309, %s308, 7
      %s311 = smul.addr %s310, 8
      %s312 = scalar_lea.vmem %s2, %s311
      %s313 = sadd.s32 %s24, %s25
      %s314 = smul.u32 4, %s313
      %s315 = sadd.s32 %s24, %s25
      %s316 = smul.u32 4, %s315
      %p317 = scmp.lt.s32.totalorder %s316, 7
      %s318 = scalar_select %p317, %s316, 7
      %s319 = smul.addr %s318, 8
      %s320 = scalar_lea.vmem %s5, %s319
      %s321 = sadd.s32 %s24, %s25
      %s322 = smul.u32 4, %s321
      %p323 = scmp.lt.s32.totalorder %s24, 1
      %s324 = scalar_select %p323, %s24, 1
      %s325 = smul.addr %s324, 8
      %s326 = scalar_lea.vmem %s6, %s325
      %p327 = scmp.lt.s32.totalorder %s24, 1
      %s328 = scalar_select %p327, %s24, 1
      %s329 = smul.addr %s328, 8
      %s330 = scalar_lea.vmem %s7, %s329
      %p331 = scmp.eq.s32.totalorder %s25, 0
      // Predicated region
      $region37: #{edge_emb_net_forward.4} parent=35 // pred_check
        %p332 = pneg %p331
      $region38: #{edge_emb_net_forward.4} parent=35 // pred_check_branch
        %334 = sbr.rel (%p332) target = $region40
      $region39: #{edge_emb_net_forward.4} parent=35 // pred_region
        %vm335 = vcmask 253952
        %336 = vst.msk [vmem:[#allocation2] sm:$0x1] %vm335, 0.0
        %337 = vst.msk [vmem:[#allocation3] sm:$0x1] %vm335, 0.0
      $region40: #{edge_emb_net_forward.4} parent=35 // pred_fallthru
        _
      %v338 = vld [vmem:[%s304] sm:$0xff]
      %v339 = vld [vmem:[%s304 + $0x8] sm:$0xff]
      %v340 = vld [vmem:[%s304 + $0x10] sm:$0xff]
      %v341 = vld [vmem:[%s304 + $0x18] sm:$0xff]
      %v342 = vld [vmem:[%s3] sm:$0xff]
      %v343 = vld [vmem:[%s3 + $0x8] sm:$0xff]
      %v344 = vld [vmem:[%s3 + $0x10] sm:$0xff]
      %v345 = vld [vmem:[%s3 + $0x18] sm:$0xff]
      %v346 = vld [vmem:[%s4] sm:$0x1]
      %v348 = vperm.slane %v346, 0
      %vm350 = vcmask 261120
      %v352 = vsel %vm350, %v338, 0
      %v355 = vsel %vm350, %v339, 0
      %v358 = vsel %vm350, %v340, 0
      %v361 = vsel %vm350, %v341, 0
      %363 = vmatpush.msra.mxu0 0.0
      %364 = vmatpush.msra.mxu0 0.0
      %365 = vmatpush.msra.mxu0 0.0
      %366 = vmatpush.msra.mxu0 0.0
      %367 = vmatpush.msra.mxu0 0.0
      %368 = vmatpush.msra.mxu0 0.0
      %369 = vmatpush.msra.mxu0 0.0
      %370 = vmatpush.msra.mxu0 0.0
      %371 = vmatpush.msra.mxu0 0.0
      %372 = vmatpush.msra.mxu0 0.0
      %373 = vmatpush.msra.mxu0 0.0
      %374 = vmatpush.msra.mxu0 0.0
      %375 = vmatpush.msra.mxu0 %v345
      %376 = vmatpush.msra.mxu0 %v344
      %377 = vmatpush.msra.mxu0 %v343
      %378 = vmatpush.msra.mxu0 %v342
      %379 = vmatmul.f32.gmra.mxu0 %v352
      %v380 = vpop.f32.mrf.mxu0
      %v381 = vadd.f32 %v348, %v380
      %382 = vmatmul.f32.gmra.mxu0 %v355
      %v383 = vpop.f32.mrf.mxu0
      %v384 = vadd.f32 %v348, %v383
      %385 = vmatmul.f32.gmra.mxu0 %v358
      %v386 = vpop.f32.mrf.mxu0
      %v387 = vadd.f32 %v348, %v386
      %388 = vmatmul.f32.gmra.mxu0 %v361
      %v389 = vpop.f32.mrf.mxu0
      %v390 = vadd.f32 %v348, %v389
      %391 = vdwg.mxu0
      %v392 = vld [vmem:[%s312] sm:$0xff]
      %v393 = vld [vmem:[%s312 + $0x8] sm:$0xff]
      %v394 = vld [vmem:[%s312 + $0x10] sm:$0xff]
      %v395 = vld [vmem:[%s312 + $0x18] sm:$0xff]
      %v396 = vadd.f32 %v381, %v392
      %v397 = vadd.f32 %v384, %v393
      %v398 = vadd.f32 %v387, %v394
      %v399 = vadd.f32 %v390, %v395
      %400 = vst.msk [vmem:[%s320] sm:$0xff] %vm350, %v396
      %401 = vst.msk [vmem:[%s320 + $0x8] sm:$0xff] %vm350, %v397
      %402 = vst.msk [vmem:[%s320 + $0x10] sm:$0xff] %vm350, %v398
      %403 = vst.msk [vmem:[%s320 + $0x18] sm:$0xff] %vm350, %v399
      %s404 = sadd.s32 %s24, %s25
      %s405 = smul.u32 %s404, 32
      %v406 = vlaneseq
      %v407 = vshrl.u32 %v406, 7
      %v408 = vadd.s32 %v407, 8
      %v409 = vadd.s32 %v407, 16
      %v410 = vadd.s32 %v407, 24
      %v411 = vstv %s405
      %v412 = vadd.s32 %v411, %v407
      %v413 = vadd.s32 %v411, %v408
      %v414 = vadd.s32 %v411, %v409
      %v415 = vadd.s32 %v411, %v410
      %s416 = sld [smem:[#allocation5]]
      %v417 = vstv %s416
      %vm418 = vcmp.lt.s32.totalorder %v412, %v417
      %vm419 = vcmp.lt.s32.totalorder %v413, %v417
      %vm420 = vcmp.lt.s32.totalorder %v414, %v417
      %vm421 = vcmp.lt.s32.totalorder %v415, %v417
      %v422 = vsel %vm418, 1, 0
      %v423 = vsel %vm419, 1, 0
      %v424 = vsel %vm420, 1, 0
      %v425 = vsel %vm421, 1, 0
      %vm426 = vcmp.eq.s32.totalorder %v422, 1
      %vm427 = vcmp.eq.s32.totalorder %v423, 1
      %vm428 = vcmp.eq.s32.totalorder %v424, 1
      %vm429 = vcmp.eq.s32.totalorder %v425, 1
      %v430 = vsel %vm426, %v396, 0.0
      %v431 = vsel %vm427, %v397, 0.0
      %v432 = vsel %vm428, %v398, 0.0
      %v433 = vsel %vm429, %v399, 0.0
      %v434 = vld [vmem:[#allocation2] sm:$0x1]
      %v435 = vsel %vm350, %v430, 0.0
      %v436 = vsel %vm350, %v431, 0.0
      %v437 = vadd.f32 %v435, %v436
      %v438 = vsel %vm350, %v432, 0.0
      %v439 = vadd.f32 %v437, %v438
      %v440 = vsel %vm350, %v433, 0.0
      %v441 = vadd.f32 %v439, %v440
      %v442 = vrot.slane %v441, 4
      %v443 = vadd.f32 %v441, %v442
      %v444 = vrot.slane %v443, 2
      %v445 = vadd.f32 %v443, %v444
      %v446 = vrot.slane %v445, 1
      %v447 = vadd.f32 %v445, %v446
      %v448 = vadd.f32 %v434, %v447
      %vm449 = vcmask 253952
      %450 = vst.msk [vmem:[#allocation2] sm:$0x1] %vm449, %v448
      %v451 = vld [vmem:[#allocation3] sm:$0x1]
      %v452 = vmul.f32 %v430, %v430
      %v453 = vmul.f32 %v431, %v431
      %v454 = vmul.f32 %v432, %v432
      %v455 = vmul.f32 %v433, %v433
      %v456 = vsel %vm350, %v452, 0.0
      %v457 = vsel %vm350, %v453, 0.0
      %v458 = vadd.f32 %v456, %v457
      %v459 = vsel %vm350, %v454, 0.0
      %v460 = vadd.f32 %v458, %v459
      %v461 = vsel %vm350, %v455, 0.0
      %v462 = vadd.f32 %v460, %v461
      %v463 = vrot.slane %v462, 4
      %v464 = vadd.f32 %v462, %v463
      %v465 = vrot.slane %v464, 2
      %v466 = vadd.f32 %v464, %v465
      %v467 = vrot.slane %v466, 1
      %v468 = vadd.f32 %v466, %v467
      %v469 = vadd.f32 %v451, %v468
      %470 = vst.msk [vmem:[#allocation3] sm:$0x1] %vm449, %v469
      // Predicated region
      $region41: #{edge_emb_net_forward.4} parent=35 // pred_check
        %p471 = pneg %p331
      $region42: #{edge_emb_net_forward.4} parent=35 // pred_check_branch
        %473 = sbr.rel (%p471) target = $region44
      $region43: #{edge_emb_net_forward.4} parent=35 // pred_region
        %v474 = vld [vmem:[#allocation2] sm:$0x1]
        %v476 = vperm.slane %v474, 0
        %478 = vst.msk [vmem:[%s326] sm:$0xff] %vm350, %v476
        %v479 = vld [vmem:[#allocation3] sm:$0x1]
        %v481 = vperm.slane %v479, 0
        %483 = vst.msk [vmem:[%s330] sm:$0xff] %vm350, %v481
      $region44: #{edge_emb_net_forward.4} parent=35 // pred_fallthru
        _
      %s484 = sadd.s32 %s24, %s25
      %s485 = smul.u32 4, %s484
      %p486 = scmp.lt.s32.totalorder %s485, 7
      %s487 = scalar_select %p486, %s485, 7
      %s488 = smul.addr %s487, 8
      %s489 = scalar_lea.vmem %s5, %s488
      %p490 = scmp.lt.s32.totalorder %s24, 1
      %s491 = scalar_select %p490, %s24, 1
      %s492 = smul.addr %s491, 8
      %s493 = scalar_lea.vmem %s6, %s492
      %p494 = scmp.lt.s32.totalorder %s24, 1
      %s495 = scalar_select %p494, %s24, 1
      %s496 = smul.addr %s495, 8
      %s497 = scalar_lea.vmem %s7, %s496
      // Predicated region
      $region45: #{edge_emb_net_forward.4} parent=35 // pred_check
        %p498 = pneg %p150
      $region46: #{edge_emb_net_forward.4} parent=35 // pred_check_branch
        %500 = sbr.rel (%p498) target = $region48
      $region47: #{edge_emb_net_forward.4} parent=35 // pred_region
        %s501 = sadd.s32 %s24, %s25
        %s502 = smul.u32 4, %s501
      $region48: #{edge_emb_net_forward.4} parent=35 // pred_fallthru
        _
      // Predicated region
      $region49: #{edge_emb_net_forward.4} parent=35 // pred_check
        %p503 = pneg %p176
      $region50: #{edge_emb_net_forward.4} parent=35 // pred_check_branch
        %505 = sbr.rel (%p503) target = $region52
      $region51: #{edge_emb_net_forward.4} parent=35 // pred_region
        _
      $region52: #{edge_emb_net_forward.4} parent=35 // pred_fallthru
        _
      // Predicated region
      $region53: #{edge_emb_net_forward.4} parent=35 // pred_check
        %p506 = pneg %p202
      $region54: #{edge_emb_net_forward.4} parent=35 // pred_check_branch
        %508 = sbr.rel (%p506) target = $region56
      $region55: #{edge_emb_net_forward.4} parent=35 // pred_region
        _
      $region56: #{edge_emb_net_forward.4} parent=35 // pred_fallthru
        _
    $region36: #{edge_emb_net_forward.4} parent=5 // pred_fallthru
      _
    %p509 = scmp.le.s32.totalorder 2, %s15
    // Predicated region
    $region57: #{edge_emb_net_forward.4} parent=5 // pred_check
      %p510 = pneg %p509
    $region58: #{edge_emb_net_forward.4} parent=5 // pred_check_branch
      %512 = sbr.rel (%p510) target = $region60
    $region59: #{edge_emb_net_forward.4} parent=5 // pred_region
      %s513 = ssub.s32 %s15, 2
      // Predicated region
      $region61: #{edge_emb_net_forward.4} parent=59 // pred_check
        %p514 = pneg %p156
      $region62: #{edge_emb_net_forward.4} parent=59 // pred_check_branch
        %516 = sbr.rel (%p514) target = $region64
      $region63: #{edge_emb_net_forward.4} parent=59 // pred_region
        %s517 = sadd.s32 %s26, %s27
        %s518 = smul.u32 4, %s517
        %p519 = scmp.lt.s32.totalorder %s518, 7
        %s520 = scalar_select %p519, %s518, 7
        %s521 = smul.addr %s520, 8
        %s522 = scalar_lea.vmem %s5, %s521
      $region64: #{edge_emb_net_forward.4} parent=59 // pred_fallthru
        _
      // Predicated region
      $region65: #{edge_emb_net_forward.4} parent=59 // pred_check
        %p523 = pneg %p182
      $region66: #{edge_emb_net_forward.4} parent=59 // pred_check_branch
        %525 = sbr.rel (%p523) target = $region68
      $region67: #{edge_emb_net_forward.4} parent=59 // pred_region
        %p526 = scmp.lt.s32.totalorder %s26, 1
        %s527 = scalar_select %p526, %s26, 1
        %s528 = smul.addr %s527, 8
        %s529 = scalar_lea.vmem %s6, %s528
      $region68: #{edge_emb_net_forward.4} parent=59 // pred_fallthru
        _
      // Predicated region
      $region69: #{edge_emb_net_forward.4} parent=59 // pred_check
        %p530 = pneg %p208
      $region70: #{edge_emb_net_forward.4} parent=59 // pred_check_branch
        %532 = sbr.rel (%p530) target = $region72
      $region71: #{edge_emb_net_forward.4} parent=59 // pred_region
        %p533 = scmp.lt.s32.totalorder %s26, 1
        %s534 = scalar_select %p533, %s26, 1
        %s535 = smul.addr %s534, 8
        %s536 = scalar_lea.vmem %s7, %s535
      $region72: #{edge_emb_net_forward.4} parent=59 // pred_fallthru
        _
    $region60: #{edge_emb_net_forward.4} parent=5 // pred_fallthru
      _
  $region6: #{edge_emb_net_forward.4} parent=0 // loop_footer
    %s19 = sadd.s32 1, %s15
  $region7: #{edge_emb_net_forward.4} parent=0 // loop_footer_branch
    %14 = sbr.rel target = $region3
  $region8: #{edge_emb_net_forward.4} parent=0 // loop_exit
    _

</llo_original>
